<compile_context>
chip_gen: v7x
topology: tpu7x:2x2x1
jax: 0.10.0
libtpu: 0.0.40
codegen_flags: <defaults>
</compile_context>

<pallas_src>
import jax
import jax.numpy as jnp
from jax.experimental import pallas as pl
from jax.experimental.pallas import tpu as pltpu

_SUBLANE = 8
_LANE = 128


def _swish_kernel(w_ref, x_ref, o_ref):
    # w_ref: SMEM scalar weight (shape (1,)); x_ref/o_ref: (block_rows, cols) VMEM tiles.
    w = w_ref[0].astype(jnp.float32)
    x = x_ref[...]
    xf = x.astype(jnp.float32)
    y = xf * jax.nn.sigmoid(w * xf)
    o_ref[...] = y.astype(o_ref.dtype)


def _pick_layout(n: int, itemsize: int):
    """Choose (cols, pad): lane-dense columns, no padding copy when possible."""
    # Prefer the widest multiple of 128 that divides n with sublane-aligned rows.
    for c in (8192, 4096, 2048, 1024, 512, 256, 128):
        if n % c == 0 and (n // c) % _SUBLANE == 0:
            return c, 0
    # Small leftover shapes: a single un-tiled block is fine if the tensor is tiny.
    for c in (1024, 512, 256, 128):
        if n % c == 0 and n * itemsize <= (2 << 20):
            return c, 0
    # Rare fallback: pad to a full tile multiple (costs one extra HBM pass).
    cols = 1024
    return cols, (-n) % (_SUBLANE * cols)


def _pick_block_rows(rows: int, cols: int, itemsize: int) -> int:
    """Block rows: ~2 MiB tiles, exact divisor of rows, multiple of 8 (or full)."""
    if rows % _SUBLANE != 0:
        return rows  # tiny/odd case (guaranteed small by _pick_layout): one block
    # ~2 MiB per tile -> double-buffered input + output = ~8 MiB VMEM footprint,
    # inside the default scoped VMEM budget on v5e/v6e/v7x.
    target = max(_SUBLANE, (2 * 1024 * 1024) // (itemsize * cols))
    # On big inputs keep >= ~8 grid blocks so v7x's two TensorCores both get work.
    if rows >= 8 * _SUBLANE:
        target = min(target, max(_SUBLANE, rows // 8))
    br = min(rows, (target // _SUBLANE) * _SUBLANE)
    while rows % br != 0:
        br -= _SUBLANE
    return br


def swish(x: jax.Array, weight: jax.Array) -> jax.Array:
    """x: arbitrary-shaped array (e.g. NCHW). weight: shape (1,) scalar param."""
    assert weight.shape == (1,), "only num_parameters=1 (scalar weight) supported"
    orig_shape = x.shape
    dtype = x.dtype
    itemsize = jnp.dtype(dtype).itemsize

    flat = x.reshape(-1)
    n = flat.shape[0]

    cols, pad = _pick_layout(n, itemsize)
    if pad:
        flat = jnp.pad(flat, (0, pad))
    total = n + pad
    rows = total // cols
    block_rows = _pick_block_rows(rows, cols, itemsize)
    grid = (rows // block_rows,)

    x2d = flat.reshape(rows, cols)
    w32 = weight.astype(jnp.float32)

    out2d = pl.pallas_call(
        _swish_kernel,
        out_shape=jax.ShapeDtypeStruct((rows, cols), dtype),
        grid=grid,
        in_specs=[
            pl.BlockSpec(memory_space=pltpu.SMEM),               # scalar weight
            pl.BlockSpec((block_rows, cols), lambda i: (i, 0)),  # lane-dense x tile
        ],
        out_specs=pl.BlockSpec((block_rows, cols), lambda i: (i, 0)),
        compiler_params=pltpu.CompilerParams(
            dimension_semantics=("parallel",),
        ),
    )(w32, x2d)

    out_flat = out2d.reshape(-1)
    if pad:
        out_flat = out_flat[:n]
    return out_flat.reshape(orig_shape)


if __name__ == "__main__":
    # Module __init__: num_parameters=1, init=1.0 -> weight = [1.0]
    num_parameters = 1
    init = 1.0
    weight = jnp.full((num_parameters,), init, dtype=jnp.float32)

    key = jax.random.PRNGKey(0)
    x = jax.random.normal(key, (2, 4, 16, 16), dtype=jnp.float32)  # NCHW

    out = swish(x, weight)
    out = jax.block_until_ready(out)

    # quick correctness check vs. pure-JAX reference
    ref = x * jax.nn.sigmoid(weight[0] * x)
    assert out.shape == x.shape and out.dtype == x.dtype
    assert jnp.allclose(out, ref, atol=1e-6, rtol=1e-6)

    print("KERNEL_OK")
</pallas_src>

<mosaic_0001>
module attributes {stable_mosaic.version = 11 : i64} {
  func.func @_swish_kernel(%arg0: i32, %arg1: memref<1xf32, #tpu.memory_space<smem>>, %arg2: memref<8x256xf32, #tpu.memory_space<vmem>>, %arg3: memref<8x256xf32, #tpu.memory_space<vmem>>) attributes {dimension_semantics = [#tpu.dimension_semantics<parallel>], iteration_bounds = array<i64: 1>, scalar_prefetch = 0 : i64, scratch_operands = 0 : i64, tpu.core_type = #tpu.core_type<tc>, window_params = [{transform_indices = @transform_0, window_bounds = array<i64: 1>}, {transform_indices = @transform_1, window_bounds = array<i64: 8, 256>}, {transform_indices = @transform_2, window_bounds = array<i64: 8, 256>}]} {
    %c0 = arith.constant 0 : index
    %0 = memref.load %arg1[%c0] : memref<1xf32, #tpu.memory_space<smem>>
    %c0_0 = arith.constant 0 : index
    %c0_1 = arith.constant 0 : index
    %1 = vector.load %arg2[%c0_0, %c0_1] : memref<8x256xf32, #tpu.memory_space<vmem>>, vector<8x256xf32>
    %2 = vector.broadcast %0 : f32 to vector<8x256xf32>
    %3 = arith.mulf %2, %1 : vector<8x256xf32>
    %4 = arith.negf %3 : vector<8x256xf32>
    %5 = math.exp %4 : vector<8x256xf32>
    %cst = arith.constant 1.000000e+00 : f32
    %6 = vector.broadcast %cst : f32 to vector<8x256xf32>
    %7 = arith.addf %6, %5 : vector<8x256xf32>
    %8 = arith.divf %6, %7 : vector<8x256xf32>
    %9 = arith.mulf %1, %8 : vector<8x256xf32>
    %c0_2 = arith.constant 0 : index
    %c0_3 = arith.constant 0 : index
    %10 = vector.load %arg3[%c0_2, %c0_3] : memref<8x256xf32, #tpu.memory_space<vmem>>, vector<8x256xf32>
    tpu.vector_store %arg3[%c0_2, %c0_3], %9 {strides = array<i32>} : memref<8x256xf32, #tpu.memory_space<vmem>>, vector<8x256xf32>,
    return
  }
  func.func @transform_0(%arg0: i32) -> i32 {
    %c0_i32 = arith.constant 0 : i32
    %c0_i32_0 = arith.constant 0 : i32
    return %c0_i32 : i32
  }
  func.func @transform_1(%arg0: i32) -> (i32, i32) {
    %c0_i32 = arith.constant 0 : i32
    %c0_i32_0 = arith.constant 0 : i32
    return %arg0, %c0_i32 : i32, i32
  }
  func.func @transform_2(%arg0: i32) -> (i32, i32) {
    %c0_i32 = arith.constant 0 : i32
    %c0_i32_0 = arith.constant 0 : i32
    return %arg0, %c0_i32 : i32, i32
  }
}

</mosaic_0001>

<llo_original>
// kernel: tpu_custom_call.1
$region0: #{tpu_custom_call.1}
  #allocation0 [shape = 'u32[]', space=smem, size = 0x4, offset = 0x4, fixed_abs, tag = 'smem constant byte address 0x4 - core index']
  #allocation1 [shape = 'u32[144,128]{1,0:T(1,128)}', space=vmem, size = 0x12000, scoped, tag = 'internal scratch']
  #allocation2 [shape = 'f32[1]{0:T(128)S(6)}', space=smem, size = 0x200, scoped, tag = 'scoped memory for tpu_custom_call.1']
  %s0 = inlined_call_operand.<no memory space> [shape: f32[1], index: 0, kind: input, shape index: {}]
  %s1 = inlined_call_operand.hbm [shape: f32[8,256], index: 1, kind: input, shape index: {}]
  %s2 = inlined_call_operand.hbm [shape: f32[8,256], index: 2, kind: output, shape index: {}]
  %s3 = sld [smem:[#allocation0]]
  $region22: #{tpu_custom_call.1} parent=0
    _
  %s5 = ssub.s32 1, %s3
  %s6 = scalar_select 0, %s5, %s3
  %7 = sst [smem:[#allocation2]] %s0
  $region1: #{tpu_custom_call.1} parent=0
    #allocation3 [shape = 'u8[8192]{0}', space=vmem, size = 0x2000, scoped, tag = 'input window, operand 1, single buffered']
    #allocation4 [shape = 's32[1]{0}', space=sflag, size = 0x4, scoped, tag = 'scoped memory for tpu_custom_call.1']
    #allocation5 [shape = 's32[1]{0}', space=sflag, size = 0x4, scoped, tag = 'scoped memory for tpu_custom_call.1']
    #allocation6 [shape = 'u8[8192]{0}', space=vmem, size = 0x2000, scoped, tag = 'output window, operand 0, single buffered']
    %8 = vsyncpa [#allocation4], 0
    %9 = vsyncpa [#allocation5], 0
    // Predicated region
    $region2: #{tpu_custom_call.1} parent=1 // pred_check
      _
    $region3: #{tpu_custom_call.1} parent=1 // pred_check_branch
      %11 = sbr.rel (0) target = $region5
    $region4: #{tpu_custom_call.1} parent=1 // pred_region
      _
    $region5: #{tpu_custom_call.1} parent=1 // pred_fallthru
      _
    // Predicated region
    $region6: #{tpu_custom_call.1} parent=1 // pred_check
      _
    $region7: #{tpu_custom_call.1} parent=1 // pred_check_branch
      %13 = sbr.rel (0) target = $region9
    $region8: #{tpu_custom_call.1} parent=1 // pred_region
      %s15 = ssub.s32 256, 256
      %16 = vsyncadd [#allocation4], %s15
      %s18 = sshll.u32 [#allocation3], 4
      %s19 = int_to_ptr.vmem [resolvable:$true] %s18
      %21 = dma.hbm_to_vmem [thread:$0]  %s1, 256, %s19, [#allocation4]
    $region9: #{tpu_custom_call.1} parent=1 // pred_fallthru
      _
    // Predicated region
    $region10: #{tpu_custom_call.1} parent=1 // pred_check
      _
    $region11: #{tpu_custom_call.1} parent=1 // pred_check_branch
      %23 = sbr.rel (0) target = $region13
    $region12: #{tpu_custom_call.1} parent=1 // pred_region
      %24 = dma.done [#allocation4], 256
    $region13: #{tpu_custom_call.1} parent=1 // pred_fallthru
      _
    %s25 = sld [smem:[#allocation2]]
    %v26 = vld [vmem:[#allocation3] sm:$0xff]
    %v27 = vld [vmem:[#allocation3 + $0x8] sm:$0xff]
    %v28 = vstv %s25
    %v29 = vmul.f32 %v28, %v26
    %v30 = vmul.f32 %v28, %v27
    %v31 = vxor.u32 %v29, 2147483648
    %v32 = vxor.u32 %v30, 2147483648
    %v33 = vmul.f32 %v31, 1.442695
    %v34 = vpow.pop %v33
    %v35 = vmul.f32 %v32, 1.442695
    %v36 = vpow.pop %v35
    %v37 = vadd.f32 %v34, 1.0
    %v38 = vadd.f32 %v36, 1.0
    %v39 = vrcp.pop %v37
    %v40 = vmul.f32 1.0, %v39
    %v41 = vrcp.pop %v38
    %v42 = vmul.f32 1.0, %v41
    %v43 = vmul.f32 %v26, %v40
    %v44 = vmul.f32 %v27, %v42
    %45 = vst [vmem:[#allocation6] sm:$0xff] %v43
    %46 = vst [vmem:[#allocation6 + $0x8] sm:$0xff] %v44
    // Predicated region
    $region14: #{tpu_custom_call.1} parent=1 // pred_check
      _
    $region15: #{tpu_custom_call.1} parent=1 // pred_check_branch
      %48 = sbr.rel (0) target = $region17
    $region16: #{tpu_custom_call.1} parent=1 // pred_region
      %s50 = ssub.s32 256, 256
      %51 = vsyncadd [#allocation5], %s50
      %s53 = sshll.u32 [#allocation6], 4
      %s54 = int_to_ptr.vmem [resolvable:$true] %s53
      %56 = dma.vmem_to_hbm [thread:$0]  %s54, 256, %s2, [#allocation5]
    $region17: #{tpu_custom_call.1} parent=1 // pred_fallthru
      _
    // Predicated region
    $region18: #{tpu_custom_call.1} parent=1 // pred_check
      _
    $region19: #{tpu_custom_call.1} parent=1 // pred_check_branch
      %58 = sbr.rel (0) target = $region21
    $region20: #{tpu_custom_call.1} parent=1 // pred_region
      %59 = dma.done [#allocation5], 256
    $region21: #{tpu_custom_call.1} parent=1 // pred_fallthru
      _
    %60 = vsyncpa [#allocation4], 1
    %61 = vsyncpa [#allocation5], 1

</llo_original>
